<compile_context>
chip_gen: v5e
topology: v5e:2x2
jax: 0.10.0
libtpu: 0.0.40
codegen_flags: <defaults>
</compile_context>

<pallas_src>
import functools

import jax
import jax.numpy as jnp
from jax.experimental import pallas as pl
from jax.experimental.pallas import tpu as pltpu


def _concrete_kernel(logits_q_ref, u_ref, log_p_ref, z_ref, kl_ref):
    """Blocks are (1, K, tb) with K on sublanes and the batch tile on lanes."""
    lq = logits_q_ref[...].astype(jnp.float32)      # (1, K, tb)
    u = u_ref[...].astype(jnp.float32)              # (1, K, tb)
    log_p = log_p_ref[...].astype(jnp.float32)      # (1, K, 1) — lane-broadcast

    f32 = jnp.float32
    tiny = jnp.finfo(f32).tiny
    eps = jnp.finfo(f32).eps

    # --- hard sample: one_hot(argmax(logits_q + gumbel)) -------------------
    # argmax(softmax((logits_q+g)/tau)) == argmax(logits_q+g) for tau>0, so the
    # temperature / softmax path is dead for the hard forward value.
    u = jnp.clip(u, tiny, 1.0 - eps)                # open interval, as in torch
    g = -jnp.log(-jnp.log(u))
    scores = lq + g                                 # (1, K, tb)

    K = scores.shape[1]
    s_max = jnp.max(scores, axis=1, keepdims=True)  # (1, 1, tb)
    iota = jax.lax.broadcasted_iota(jnp.int32, scores.shape, 1)
    is_max = scores >= s_max
    # first-max index (matches jnp.argmax / torch argmax tie-breaking)
    first_idx = jnp.min(jnp.where(is_max, iota, K), axis=1, keepdims=True)
    z_ref[...] = (iota == first_idx).astype(z_ref.dtype)

    # --- categorical KL(q || p), reduction over K (sublane axis) -----------
    m = jnp.max(lq, axis=1, keepdims=True)          # (1, 1, tb)
    shifted = lq - m
    e = jnp.exp(shifted)                            # single exp per element
    s = jnp.sum(e, axis=1, keepdims=True)           # (1, 1, tb)
    log_q = shifted - jnp.log(s)
    probs_q = e * (1.0 / s)                         # one divide per lane column
    kl = jnp.sum(probs_q * (log_q - log_p), axis=1, keepdims=True)  # (1, 1, tb)
    kl_ref[...] = kl.astype(kl_ref.dtype)


@functools.partial(jax.jit, static_argnames=("block_b",))
def concrete_relaxation_forward(logits_q, uniforms, tau, logits_p, *,
                                block_b=1024):
    """Forward pass of ConcreteRelaxation (hard=True, categorical KL).

    logits_q, uniforms: (B, M, K); tau: (M, 1); logits_p: (M, K).
    Returns {'z': (B, M, K) one-hot, 'kl': (B, M)}.
    """
    B, M, K = logits_q.shape
    z_dtype = logits_q.dtype  # z is an exact 0/1 one-hot; callers that can take
                              # bf16/int8 may narrow this to cut writeback bytes.

    # TODO(synk): tau (clamped to [0.3, 10] in the module), the straight-through
    # .detach() gradient, and the tau_mode='anneal' scheduler are training-time /
    # autodiff concerns; the hard forward value and categorical KL do not depend
    # on tau, so it is not consumed by the kernel.
    del tau

    # Lane-dense layout: batch on lanes, categorical axis K on sublanes.
    lq_t = jnp.transpose(logits_q, (1, 2, 0))       # (M, K, B)
    u_t = jnp.transpose(uniforms, (1, 2, 0))        # (M, K, B)
    # Prior log-softmax precomputed on the tiny (M, K) parameter in the wrapper.
    log_p = jax.nn.log_softmax(logits_p.astype(jnp.float32), axis=-1)[..., None]  # (M, K, 1)

    # Batch-tile size: full array if small, else a multiple of 128 lanes.
    if B <= block_b or B <= 128:
        tb = B
    else:
        tb = max(128, (min(block_b, B) // 128) * 128)
    nb = pl.cdiv(B, tb)

    z_t, kl_t = pl.pallas_call(
        _concrete_kernel,
        out_shape=(
            jax.ShapeDtypeStruct((M, K, B), z_dtype),
            jax.ShapeDtypeStruct((M, 1, B), jnp.float32),
        ),
        grid=(M, nb),
        in_specs=[
            pl.BlockSpec((1, K, tb), lambda m, b: (m, 0, b)),
            pl.BlockSpec((1, K, tb), lambda m, b: (m, 0, b)),
            pl.BlockSpec((1, K, 1), lambda m, b: (m, 0, 0)),
        ],
        out_specs=(
            pl.BlockSpec((1, K, tb), lambda m, b: (m, 0, b)),
            pl.BlockSpec((1, 1, tb), lambda m, b: (m, 0, b)),
        ),
        compiler_params=pltpu.CompilerParams(
            # Both grid axes are embarrassingly parallel (rows independent);
            # lets v7x's two TensorCores split the work.
            dimension_semantics=("parallel", "parallel"),
            # Sized for v7x's 64 MiB physical / 32 MiB default scoped VMEM;
            # blocks here are tiny so this is generous headroom everywhere.
            vmem_limit_bytes=32 * 1024 * 1024,
        ),
    )(lq_t, u_t, log_p)

    z = jnp.transpose(z_t, (2, 0, 1))               # (B, M, K)
    kl = jnp.transpose(kl_t[:, 0, :], (1, 0))       # (B, M)
    return {"z": z, "kl": kl}


def _reference_forward(logits_q, uniforms, tau, logits_p):
    """Pure-JAX reference mirroring the PyTorch module (hard=True, cat. KL)."""
    f32 = jnp.float32
    tau_c = jnp.clip(tau, 0.3, 10.0)                                  # (M, 1)
    u = jnp.clip(uniforms, jnp.finfo(f32).tiny, 1.0 - jnp.finfo(f32).eps)
    g = -jnp.log(-jnp.log(u))
    scores = (logits_q + g) / tau_c[None]                             # (B, M, K)
    z_soft = jax.nn.softmax(scores, axis=-1)
    z_hard = jax.nn.one_hot(jnp.argmax(z_soft, axis=-1),
                            logits_q.shape[-1], dtype=logits_q.dtype)
    log_q = jax.nn.log_softmax(logits_q, axis=-1)
    log_p = jax.nn.log_softmax(logits_p, axis=-1)[None]
    kl = jnp.sum(jnp.exp(log_q) * (log_q - log_p), axis=-1)
    return z_hard, kl


if __name__ == "__main__":
    # Module defaults: K=10 codebook entries, M=2 latent groups.
    B, M, K = 4, 2, 10

    key = jax.random.PRNGKey(0)
    k_logits, k_unif, k_logits2, k_unif2 = jax.random.split(key, 4)

    logits_q = jax.random.normal(k_logits, (B, M, K), dtype=jnp.float32)
    # torch's q.sample() draws uniforms internally; here the noise is an
    # explicit deterministic input (RNG sampling has no Pallas equivalent).
    uniforms = jax.random.uniform(k_unif, (B, M, K), dtype=jnp.float32)

    # Deterministic parameter init, matching the module __init__:
    tau = jnp.ones((M, 1), dtype=jnp.float32)        # tau buffer, init_tau=1.0
    logits_p = jnp.ones((M, K), dtype=jnp.float32)   # KL prior logits (init ones)

    out = concrete_relaxation_forward(logits_q, uniforms, tau, logits_p)
    jax.block_until_ready(out)

    z_ref, kl_ref = _reference_forward(logits_q, uniforms, tau, logits_p)
    assert out["z"].shape == (B, M, K) and out["kl"].shape == (B, M)
    assert jnp.allclose(out["z"], z_ref)
    assert jnp.allclose(out["kl"], kl_ref, atol=1e-5, rtol=1e-5)
    assert jnp.allclose(jnp.sum(out["z"], axis=-1), 1.0)   # valid one-hot rows

    # Exercise the multi-block (tiled batch) path with a modest batch.
    B2 = 256
    logits_q2 = jax.random.normal(k_logits2, (B2, M, K), dtype=jnp.float32)
    uniforms2 = jax.random.uniform(k_unif2, (B2, M, K), dtype=jnp.float32)
    out2 = concrete_relaxation_forward(logits_q2, uniforms2, tau, logits_p,
                                       block_b=128)
    jax.block_until_ready(out2)
    z_ref2, kl_ref2 = _reference_forward(logits_q2, uniforms2, tau, logits_p)
    assert jnp.allclose(out2["z"], z_ref2)
    assert jnp.allclose(out2["kl"], kl_ref2, atol=1e-5, rtol=1e-5)

    print("KERNEL_OK")
</pallas_src>

<mosaic_0001>
module attributes {stable_mosaic.version = 11 : i64} {
  func.func @_concrete_kernel(%arg0: i32, %arg1: i32, %arg2: memref<1x10x4xf32, #tpu.memory_space<vmem>>, %arg3: memref<1x10x4xf32, #tpu.memory_space<vmem>>, %arg4: memref<1x10x1xf32, #tpu.memory_space<vmem>>, %arg5: memref<1x10x4xf32, #tpu.memory_space<vmem>>, %arg6: memref<1x1x4xf32, #tpu.memory_space<vmem>>) attributes {dimension_semantics = [#tpu.dimension_semantics<parallel>, #tpu.dimension_semantics<parallel>], iteration_bounds = array<i64: 2, 1>, scalar_prefetch = 0 : i64, scratch_operands = 0 : i64, tpu.core_type = #tpu.core_type<tc>, window_params = [{transform_indices = @transform_0, window_bounds = array<i64: 1, 10, 4>}, {transform_indices = @transform_1, window_bounds = array<i64: 1, 10, 4>}, {transform_indices = @transform_2, window_bounds = array<i64: 1, 10, 1>}, {transform_indices = @transform_3, window_bounds = array<i64: 1, 10, 4>}, {transform_indices = @transform_4, window_bounds = array<i64: 1, 1, 4>}]} {
    %c0 = arith.constant 0 : index
    %c0_0 = arith.constant 0 : index
    %c0_1 = arith.constant 0 : index
    %0 = vector.load %arg2[%c0, %c0_0, %c0_1] : memref<1x10x4xf32, #tpu.memory_space<vmem>>, vector<1x10x4xf32>
    %c0_2 = arith.constant 0 : index
    %c0_3 = arith.constant 0 : index
    %c0_4 = arith.constant 0 : index
    %1 = vector.load %arg3[%c0_2, %c0_3, %c0_4] : memref<1x10x4xf32, #tpu.memory_space<vmem>>, vector<1x10x4xf32>
    %c0_5 = arith.constant 0 : index
    %c0_6 = arith.constant 0 : index
    %c0_7 = arith.constant 0 : index
    %2 = vector.load %arg4[%c0_5, %c0_6, %c0_7] : memref<1x10x1xf32, #tpu.memory_space<vmem>>, vector<1x10x1xf32>
    %cst = arith.constant 1.17549435E-38 : f32
    %cst_8 = arith.constant 0.99999988 : f32
    %3 = vector.broadcast %cst : f32 to vector<1x10x4xf32>
    %4 = arith.maximumf %3, %1 : vector<1x10x4xf32>
    %5 = vector.broadcast %cst_8 : f32 to vector<1x10x4xf32>
    %6 = arith.minimumf %5, %4 : vector<1x10x4xf32>
    %7 = math.log %6 : vector<1x10x4xf32>
    %cst_9 = arith.constant 0.000000e+00 : f32
    %8 = vector.broadcast %cst_9 : f32 to vector<1x10x4xf32>
    %9 = arith.subf %8, %7 : vector<1x10x4xf32>
    %10 = math.log %9 : vector<1x10x4xf32>
    %cst_10 = arith.constant 0.000000e+00 : f32
    %11 = vector.broadcast %cst_10 : f32 to vector<1x10x4xf32>
    %12 = arith.subf %11, %10 : vector<1x10x4xf32>
    %13 = arith.addf %0, %12 : vector<1x10x4xf32>
    %cst_11 = arith.constant dense<0xFF800000> : vector<1x4xf32>
    %14 = vector.multi_reduction <maximumf>, %13, %cst_11 [1] : vector<1x10x4xf32> to vector<1x4xf32>
    %15 = vector.shape_cast %14 : vector<1x4xf32> to vector<1x1x4xf32>
    %16 = tpu.iota {dimensions = array<i32: 1>} : vector<1x10x4xi32>
    %17 = vector.broadcast %15 : vector<1x1x4xf32> to vector<1x10x4xf32>
    %18 = arith.cmpf oge, %13, %17 : vector<1x10x4xf32>
    %c10_i32 = arith.constant 10 : i32
    %19 = vector.broadcast %c10_i32 : i32 to vector<1x10x4xi32>
    %20 = arith.select %18, %16, %19 : vector<1x10x4xi1>, vector<1x10x4xi32>
    %cst_12 = arith.constant dense<2147483647> : vector<1x4xi32>
    %21 = vector.multi_reduction <minsi>, %20, %cst_12 [1] : vector<1x10x4xi32> to vector<1x4xi32>
    %22 = vector.shape_cast %21 : vector<1x4xi32> to vector<1x1x4xi32>
    %23 = vector.broadcast %22 : vector<1x1x4xi32> to vector<1x10x4xi32>
    %24 = arith.cmpi eq, %16, %23 : vector<1x10x4xi32>
    %25 = arith.extui %24 : vector<1x10x4xi1> to vector<1x10x4xi32>
    %26 = arith.sitofp %25 : vector<1x10x4xi32> to vector<1x10x4xf32>
    %c0_13 = arith.constant 0 : index
    %c0_14 = arith.constant 0 : index
    %c0_15 = arith.constant 0 : index
    %27 = vector.load %arg5[%c0_13, %c0_14, %c0_15] : memref<1x10x4xf32, #tpu.memory_space<vmem>>, vector<1x10x4xf32>
    tpu.vector_store %arg5[%c0_13, %c0_14, %c0_15], %26 {strides = array<i32>} : memref<1x10x4xf32, #tpu.memory_space<vmem>>, vector<1x10x4xf32>,
    %cst_16 = arith.constant dense<0xFF800000> : vector<1x4xf32>
    %28 = vector.multi_reduction <maximumf>, %0, %cst_16 [1] : vector<1x10x4xf32> to vector<1x4xf32>
    %29 = vector.shape_cast %28 : vector<1x4xf32> to vector<1x1x4xf32>
    %30 = vector.broadcast %29 : vector<1x1x4xf32> to vector<1x10x4xf32>
    %31 = arith.subf %0, %30 : vector<1x10x4xf32>
    %32 = math.exp %31 : vector<1x10x4xf32>
    %cst_17 = arith.constant dense<0.000000e+00> : vector<1x4xf32>
    %33 = vector.multi_reduction <add>, %32, %cst_17 [1] : vector<1x10x4xf32> to vector<1x4xf32>
    %34 = vector.shape_cast %33 : vector<1x4xf32> to vector<1x1x4xf32>
    %35 = math.log %34 : vector<1x1x4xf32>
    %36 = vector.broadcast %35 : vector<1x1x4xf32> to vector<1x10x4xf32>
    %37 = arith.subf %31, %36 : vector<1x10x4xf32>
    %cst_18 = arith.constant 1.000000e+00 : f32
    %38 = vector.broadcast %cst_18 : f32 to vector<1x1x4xf32>
    %39 = arith.divf %38, %34 : vector<1x1x4xf32>
    %40 = vector.broadcast %39 : vector<1x1x4xf32> to vector<1x10x4xf32>
    %41 = arith.mulf %32, %40 : vector<1x10x4xf32>
    %42 = vector.broadcast %2 : vector<1x10x1xf32> to vector<1x10x4xf32>
    %43 = arith.subf %37, %42 : vector<1x10x4xf32>
    %44 = arith.mulf %41, %43 : vector<1x10x4xf32>
    %cst_19 = arith.constant dense<0.000000e+00> : vector<1x4xf32>
    %45 = vector.multi_reduction <add>, %44, %cst_19 [1] : vector<1x10x4xf32> to vector<1x4xf32>
    %46 = vector.shape_cast %45 : vector<1x4xf32> to vector<1x1x4xf32>
    %c0_20 = arith.constant 0 : index
    %c0_21 = arith.constant 0 : index
    %c0_22 = arith.constant 0 : index
    %47 = vector.load %arg6[%c0_20, %c0_21, %c0_22] : memref<1x1x4xf32, #tpu.memory_space<vmem>>, vector<1x1x4xf32>
    tpu.vector_store %arg6[%c0_20, %c0_21, %c0_22], %46 {strides = array<i32>} : memref<1x1x4xf32, #tpu.memory_space<vmem>>, vector<1x1x4xf32>,
    return
  }
  func.func @transform_0(%arg0: i32, %arg1: i32) -> (i32, i32, i32) {
    %c0_i32 = arith.constant 0 : i32
    %c0_i32_0 = arith.constant 0 : i32
    return %arg0, %c0_i32, %arg1 : i32, i32, i32
  }
  func.func @transform_1(%arg0: i32, %arg1: i32) -> (i32, i32, i32) {
    %c0_i32 = arith.constant 0 : i32
    %c0_i32_0 = arith.constant 0 : i32
    return %arg0, %c0_i32, %arg1 : i32, i32, i32
  }
  func.func @transform_2(%arg0: i32, %arg1: i32) -> (i32, i32, i32) {
    %c0_i32 = arith.constant 0 : i32
    %c0_i32_0 = arith.constant 0 : i32
    %c0_i32_1 = arith.constant 0 : i32
    return %arg0, %c0_i32, %c0_i32_0 : i32, i32, i32
  }
  func.func @transform_3(%arg0: i32, %arg1: i32) -> (i32, i32, i32) {
    %c0_i32 = arith.constant 0 : i32
    %c0_i32_0 = arith.constant 0 : i32
    return %arg0, %c0_i32, %arg1 : i32, i32, i32
  }
  func.func @transform_4(%arg0: i32, %arg1: i32) -> (i32, i32, i32) {
    %c0_i32 = arith.constant 0 : i32
    %c0_i32_0 = arith.constant 0 : i32
    return %arg0, %c0_i32, %arg1 : i32, i32, i32
  }
}

</mosaic_0001>

<llo_original>
// kernel: concrete_relaxation_forward.1
$region0: #{concrete_relaxation_forward.1}
  #allocation0 [shape = 'u32[]', space=smem, size = 0x4, offset = 0x4, fixed_abs, tag = 'smem constant byte address 0x4 - core index']
  #allocation1 [shape = 'u32[72,128]{1,0:T(1,128)}', space=vmem, size = 0x9000, scoped, tag = 'internal scratch']
  %s0 = inlined_call_operand.vmem [shape: f32[2,10,4], index: 0, kind: input, shape index: {}]
  %s1 = inlined_call_operand.vmem [shape: f32[2,10,4], index: 1, kind: input, shape index: {}]
  %s2 = inlined_call_operand.vmem [shape: f32[2,10,1], index: 2, kind: input, shape index: {}]
  %s3 = inlined_call_operand.vmem [shape: f32[2,10,4], index: 3, kind: output, shape index: {0}]
  %s4 = inlined_call_operand.hbm [shape: f32[2,1,4], index: 4, kind: output, shape index: {1}]
  %5 = xla_tuple %s3, %s4
  %s6 = sld [smem:[#allocation0]]
  $region53: #{concrete_relaxation_forward.1} parent=0
    _
  %s8 = ssub.s32 1, %s6
  %s9 = scalar_select 0, %s8, %s6
  $region1: #{concrete_relaxation_forward.1} parent=0
    #allocation2 [shape = 'u8[1024]{0}', space=vmem, size = 0x400, scoped, tag = 'output window, operand 1']
    #allocation3 [shape = 's32[2]{0}', space=sflag, size = 0x8, scoped, tag = 'scoped memory for concrete_relaxation_forward.1']
    %10 = vsyncpa [#allocation3], 0
    %s11 = scalar_lea.sflag [#allocation3], 1
    %12 = vsyncpa %s11, 0
    loop: start=0, step=1, limit=4
    $region2: #{concrete_relaxation_forward.1} parent=1 // loop_pre_header
      _
    $region3: #{concrete_relaxation_forward.1} parent=1 // loop_header
      %s14 = sphi 0, %s18
      %p15 = scmp.ge.s32.totalorder %s14, 4
      %s21 = sphi 0, %s33
      %s22 = sphi 0, %s29
      %s23 = sphi 0, %s21
      %s24 = sphi 0, %s22
      %s25 = sphi 0, %s23
      %s26 = sphi 0, %s24
      %s38 = sphi 0, %s40
      %s41 = sphi 0, %s38
      %s42 = sphi 0, %s41
      %s58 = sphi 0, %s42
      %s66 = sphi 0, %s68
      %s69 = sphi 0, %s66
      %s70 = sphi 0, %s69
      %s86 = sphi 0, %s70
      %s92 = sphi 0, %s94
      %s95 = sphi 0, %s92
      %s96 = sphi 0, %s95
      %s112 = sphi 0, %s96
      %s120 = sphi 0, %s122
      %s123 = sphi 0, %s120
      %s124 = sphi 0, %s123
      %s140 = sphi 0, %s124
      %s148 = sphi 0, %s150
      %s151 = sphi 0, %s148
      %s152 = sphi 0, %s151
      %s168 = sphi 0, %s152
    $region4: #{concrete_relaxation_forward.1} parent=1 // loop_header_branch
      %17 = sbr.rel (%p15) target = $region8
    $region5: #{concrete_relaxation_forward.1} parent=1 // loop_body
      %s19 = ssub.s32 %s14, 1
      %s20 = ssub.s32 %s14, 2
      %s27 = sadd.s32 1, %s22
      %p28 = scmp.ge.s32.totalorder %s27, 1
      %s29 = scalar_select %p28, 0, %s27
      %s30 = sadd.s32 1, %s21
      %s31 = scalar_select %p28, %s30, %s21
      %p32 = scmp.ge.s32.totalorder %s31, 2
      %s33 = scalar_select %p32, 0, %s31
      %s34 = ssub.s32 %s21, %s33
      %s35 = ssub.s32 %s22, %s29
      %s36 = sor.u32 %s34, %s35
      %p37 = scmp.eq.s32.totalorder %s36, 0
      %s39 = sadd.s32 %s38, 1
      %s40 = scalar_select %p37, %s38, %s39
      %p43 = pneg %p37
      %p44 = scmp.eq.s32.totalorder %s14, 1
      %p45 = por %p43, %p44
      %p46 = scmp.ne.s32.totalorder %s38, %s41
      %p47 = scmp.eq.s32.totalorder %s14, 0
      %p48 = por %p46, %p47
      %p49 = scmp.ne.s32.totalorder %s38, %s41
      %p50 = scmp.eq.s32.totalorder %s19, 1
      %p51 = por %p49, %p50
      %p52 = scmp.ne.s32.totalorder %s41, %s42
      %p53 = scmp.eq.s32.totalorder %s19, 0
      %p54 = por %p52, %p53
      %p55 = scmp.ne.s32.totalorder %s41, %s42
      %p56 = scmp.eq.s32.totalorder %s20, 1
      %p57 = por %p55, %p56
      %p59 = scmp.ne.s32.totalorder %s42, %s58
      %p60 = scmp.eq.s32.totalorder %s20, 0
      %p61 = por %p59, %p60
      %s62 = ssub.s32 %s21, %s33
      %s63 = ssub.s32 %s22, %s29
      %s64 = sor.u32 %s62, %s63
      %p65 = scmp.eq.s32.totalorder %s64, 0
      %s67 = sadd.s32 %s66, 1
      %s68 = scalar_select %p65, %s66, %s67
      %p71 = pneg %p65
      %p72 = scmp.eq.s32.totalorder %s14, 1
      %p73 = por %p71, %p72
      %p74 = scmp.ne.s32.totalorder %s66, %s69
      %p75 = scmp.eq.s32.totalorder %s14, 0
      %p76 = por %p74, %p75
      %p77 = scmp.ne.s32.totalorder %s66, %s69
      %p78 = scmp.eq.s32.totalorder %s19, 1
      %p79 = por %p77, %p78
      %p80 = scmp.ne.s32.totalorder %s69, %s70
      %p81 = scmp.eq.s32.totalorder %s19, 0
      %p82 = por %p80, %p81
      %p83 = scmp.ne.s32.totalorder %s69, %s70
      %p84 = scmp.eq.s32.totalorder %s20, 1
      %p85 = por %p83, %p84
      %p87 = scmp.ne.s32.totalorder %s70, %s86
      %p88 = scmp.eq.s32.totalorder %s20, 0
      %p89 = por %p87, %p88
      %s90 = ssub.s32 %s21, %s33
      %p91 = scmp.eq.s32.totalorder %s90, 0
      %s93 = sadd.s32 %s92, 1
      %s94 = scalar_select %p91, %s92, %s93
      %p97 = pneg %p91
      %p98 = scmp.eq.s32.totalorder %s14, 1
      %p99 = por %p97, %p98
      %p100 = scmp.ne.s32.totalorder %s92, %s95
      %p101 = scmp.eq.s32.totalorder %s14, 0
      %p102 = por %p100, %p101
      %p103 = scmp.ne.s32.totalorder %s92, %s95
      %p104 = scmp.eq.s32.totalorder %s19, 1
      %p105 = por %p103, %p104
      %p106 = scmp.ne.s32.totalorder %s95, %s96
      %p107 = scmp.eq.s32.totalorder %s19, 0
      %p108 = por %p106, %p107
      %p109 = scmp.ne.s32.totalorder %s95, %s96
      %p110 = scmp.eq.s32.totalorder %s20, 1
      %p111 = por %p109, %p110
      %p113 = scmp.ne.s32.totalorder %s96, %s112
      %p114 = scmp.eq.s32.totalorder %s20, 0
      %p115 = por %p113, %p114
      %s116 = ssub.s32 %s21, %s33
      %s117 = ssub.s32 %s22, %s29
      %s118 = sor.u32 %s116, %s117
      %p119 = scmp.eq.s32.totalorder %s118, 0
      %s121 = sadd.s32 %s120, 1
      %s122 = scalar_select %p119, %s120, %s121
      %p125 = pneg %p119
      %p126 = scmp.eq.s32.totalorder %s14, 1
      %p127 = por %p125, %p126
      %p128 = scmp.ne.s32.totalorder %s120, %s123
      %p129 = scmp.eq.s32.totalorder %s14, 0
      %p130 = por %p128, %p129
      %p131 = scmp.ne.s32.totalorder %s120, %s123
      %p132 = scmp.eq.s32.totalorder %s19, 1
      %p133 = por %p131, %p132
      %p134 = scmp.ne.s32.totalorder %s123, %s124
      %p135 = scmp.eq.s32.totalorder %s19, 0
      %p136 = por %p134, %p135
      %p137 = scmp.ne.s32.totalorder %s123, %s124
      %p138 = scmp.eq.s32.totalorder %s20, 1
      %p139 = por %p137, %p138
      %p141 = scmp.ne.s32.totalorder %s124, %s140
      %p142 = scmp.eq.s32.totalorder %s20, 0
      %p143 = por %p141, %p142
      %s144 = ssub.s32 %s21, %s33
      %s145 = ssub.s32 %s22, %s29
      %s146 = sor.u32 %s144, %s145
      %p147 = scmp.eq.s32.totalorder %s146, 0
      %s149 = sadd.s32 %s148, 1
      %s150 = scalar_select %p147, %s148, %s149
      %p153 = pneg %p147
      %p154 = scmp.eq.s32.totalorder %s14, 1
      %p155 = por %p153, %p154
      %p156 = scmp.ne.s32.totalorder %s148, %s151
      %p157 = scmp.eq.s32.totalorder %s14, 0
      %p158 = por %p156, %p157
      %p159 = scmp.ne.s32.totalorder %s148, %s151
      %p160 = scmp.eq.s32.totalorder %s19, 1
      %p161 = por %p159, %p160
      %p162 = scmp.ne.s32.totalorder %s151, %s152
      %p163 = scmp.eq.s32.totalorder %s19, 0
      %p164 = por %p162, %p163
      %p165 = scmp.ne.s32.totalorder %s151, %s152
      %p166 = scmp.eq.s32.totalorder %s20, 1
      %p167 = por %p165, %p166
      %p169 = scmp.ne.s32.totalorder %s152, %s168
      %p170 = scmp.eq.s32.totalorder %s20, 0
      %p171 = por %p169, %p170
      %p172 = scmp.le.s32.totalorder 1, %s14
      %p173 = scmp.lt.s32.totalorder %s14, 3
      %p174 = pnand %p172, %p173
      %p175 = pneg %p174
      // Predicated region
      $region9: #{concrete_relaxation_forward.1} parent=5 // pred_check
        _
      $region10: #{concrete_relaxation_forward.1} parent=5 // pred_check_branch
        %177 = sbr.rel (%p174) target = $region12
      $region11: #{concrete_relaxation_forward.1} parent=5 // pred_region
        %s178 = ssub.s32 %s14, 1
      $region12: #{concrete_relaxation_forward.1} parent=5 // pred_fallthru
        _
      %p179 = scmp.lt.s32.totalorder %s14, 2
      // Predicated region
      $region13: #{concrete_relaxation_forward.1} parent=5 // pred_check
        %p180 = pneg %p179
      $region14: #{concrete_relaxation_forward.1} parent=5 // pred_check_branch
        %182 = sbr.rel (%p180) target = $region16
      $region15: #{concrete_relaxation_forward.1} parent=5 // pred_region
        // Predicated region
        $region17: #{concrete_relaxation_forward.1} parent=15 // pred_check
          %p183 = pneg %p48
        $region18: #{concrete_relaxation_forward.1} parent=15 // pred_check_branch
          %185 = sbr.rel (%p183) target = $region20
        $region19: #{concrete_relaxation_forward.1} parent=15 // pred_region
          %p186 = scmp.lt.s32.totalorder %s21, 1
          %s187 = scalar_select %p186, %s21, 1
          %p188 = scmp.lt.s32.totalorder %s22, 0
          %s189 = scalar_select %p188, %s22, 0
          %s190 = smul.addr %s187, 2
          %s191 = sadd.s32 %s189, %s190
          %s192 = smul.addr %s191, 8
          %s193 = scalar_lea.vmem %s0, %s192
        $region20: #{concrete_relaxation_forward.1} parent=15 // pred_fallthru
          _
        // Predicated region
        $region21: #{concrete_relaxation_forward.1} parent=15 // pred_check
          %p194 = pneg %p76
        $region22: #{concrete_relaxation_forward.1} parent=15 // pred_check_branch
          %196 = sbr.rel (%p194) target = $region24
        $region23: #{concrete_relaxation_forward.1} parent=15 // pred_region
          %p197 = scmp.lt.s32.totalorder %s21, 1
          %s198 = scalar_select %p197, %s21, 1
          %p199 = scmp.lt.s32.totalorder %s22, 0
          %s200 = scalar_select %p199, %s22, 0
          %s201 = smul.addr %s198, 2
          %s202 = sadd.s32 %s200, %s201
          %s203 = smul.addr %s202, 8
          %s204 = scalar_lea.vmem %s1, %s203
        $region24: #{concrete_relaxation_forward.1} parent=15 // pred_fallthru
          _
        // Predicated region
        $region25: #{concrete_relaxation_forward.1} parent=15 // pred_check
          %p205 = pneg %p102
        $region26: #{concrete_relaxation_forward.1} parent=15 // pred_check_branch
          %207 = sbr.rel (%p205) target = $region28
        $region27: #{concrete_relaxation_forward.1} parent=15 // pred_region
          %p208 = scmp.lt.s32.totalorder %s21, 1
          %s209 = scalar_select %p208, %s21, 1
          %s210 = smul.addr %s209, 2
          %s211 = smul.addr %s210, 8
          %s212 = scalar_lea.vmem %s2, %s211
        $region28: #{concrete_relaxation_forward.1} parent=15 // pred_fallthru
          _
      $region16: #{concrete_relaxation_forward.1} parent=5 // pred_fallthru
        _
      %p213 = scmp.le.s32.totalorder 1, %s14
      %p214 = scmp.lt.s32.totalorder %s14, 3
      %p215 = pnand %p213, %p214
      %p216 = pneg %p215
      // Predicated region
      $region29: #{concrete_relaxation_forward.1} parent=5 // pred_check
        _
      $region30: #{concrete_relaxation_forward.1} parent=5 // pred_check_branch
        %218 = sbr.rel (%p215) target = $region32
      $region31: #{concrete_relaxation_forward.1} parent=5 // pred_region
        %s219 = ssub.s32 %s14, 1
        %p220 = scmp.lt.s32.totalorder %s23, 1
        %s221 = scalar_select %p220, %s23, 1
        %p222 = scmp.lt.s32.totalorder %s24, 0
        %s223 = scalar_select %p222, %s24, 0
        %s224 = smul.addr %s221, 2
        %s225 = sadd.s32 %s223, %s224
        %s226 = smul.addr %s225, 8
        %s227 = scalar_lea.vmem %s0, %s226
        %p228 = pneg %p54
        %p229 = pneg %p51
        %p230 = scmp.lt.s32.totalorder %s23, 1
        %s231 = scalar_select %p230, %s23, 1
        %p232 = scmp.lt.s32.totalorder %s24, 0
        %s233 = scalar_select %p232, %s24, 0
        %s234 = smul.addr %s231, 2
        %s235 = sadd.s32 %s233, %s234
        %s236 = smul.addr %s235, 8
        %s237 = scalar_lea.vmem %s1, %s236
        %p238 = pneg %p82
        %p239 = pneg %p79
        %p240 = scmp.lt.s32.totalorder %s23, 1
        %s241 = scalar_select %p240, %s23, 1
        %s242 = smul.addr %s241, 2
        %s243 = smul.addr %s242, 8
        %s244 = scalar_lea.vmem %s2, %s243
        %p245 = pneg %p108
        %p246 = pneg %p105
        %p247 = pneg %p136
        %p248 = pneg %p133
        %p249 = scmp.lt.s32.totalorder %s23, 1
        %s250 = scalar_select %p249, %s23, 1
        %p251 = scmp.lt.s32.totalorder %s24, 0
        %s252 = scalar_select %p251, %s24, 0
        %s253 = smul.addr %s250, 2
        %s254 = sadd.s32 %s252, %s253
        %s255 = smul.addr %s254, 8
        %s256 = scalar_lea.vmem %s3, %s255
        %p257 = pneg %p164
        %p258 = pneg %p161
        %s259 = sand.u32 %s151, 1
        %s260 = scalar_lea.sflag [#allocation3], %s259
        %s261 = sand.u32 %s151, 1
        %s262 = scalar_lea.vmem [#allocation2], %s261
        %p263 = scmp.lt.s32.totalorder %s23, 1
        %s264 = scalar_select %p263, %s23, 1
        %p265 = scmp.lt.s32.totalorder %s24, 0
        %s266 = scalar_select %p265, %s24, 0
        %s267 = smul.addr %s264, 2
        %s268 = sadd.s32 %s266, %s267
        %s269 = smul.addr %s268, 8
        %s270 = scalar_lea.vmem %s0, %s269
        %p271 = scmp.lt.s32.totalorder %s23, 1
        %s272 = scalar_select %p271, %s23, 1
        %p273 = scmp.lt.s32.totalorder %s24, 0
        %s274 = scalar_select %p273, %s24, 0
        %s275 = smul.addr %s272, 2
        %s276 = sadd.s32 %s274, %s275
        %s277 = smul.addr %s276, 8
        %s278 = scalar_lea.vmem %s1, %s277
        %p279 = scmp.lt.s32.totalorder %s23, 1
        %s280 = scalar_select %p279, %s23, 1
        %s281 = smul.addr %s280, 2
        %s282 = smul.addr %s281, 8
        %s283 = scalar_lea.vmem %s2, %s282
        %p284 = scmp.lt.s32.totalorder %s23, 1
        %s285 = scalar_select %p284, %s23, 1
        %p286 = scmp.lt.s32.totalorder %s24, 0
        %s287 = scalar_select %p286, %s24, 0
        %s288 = smul.addr %s285, 2
        %s289 = sadd.s32 %s287, %s288
        %s290 = smul.addr %s289, 8
        %s291 = scalar_lea.vmem %s3, %s290
        %v292 = vld [vmem:[%s270] sm:$0xff]
        %v293 = vld [vmem:[%s270 + $0x8] sm:$0x3]
        %v294 = vld [vmem:[%s278] sm:$0xff]
        %v295 = vld [vmem:[%s278 + $0x8] sm:$0x3]
        %v296 = vld [vmem:[%s283] sm:$0xff]
        %v297 = vld [vmem:[%s283 + $0x8] sm:$0x3]
        %v298 = vmax.f32 %v294, 1.1754944e-38
        %v299 = vmax.f32 %v295, 1.1754944e-38
        %v300 = vmin.f32 %v298, 0.9999999
        %v301 = vmin.f32 %v299, 0.9999999
        %v302 = vlog2.pop %v300
        %v303 = vmul.f32 %v302, 0.6931472
        %v304 = vlog2.pop %v301
        %v305 = vmul.f32 %v304, 0.6931472
        %v306 = vsub.f32 0.0, %v303
        %v307 = vsub.f32 0.0, %v305
        %v308 = vlog2.pop %v306
        %v309 = vmul.f32 %v308, 0.6931472
        %v310 = vlog2.pop %v307
        %v311 = vmul.f32 %v310, 0.6931472
        %v312 = vsub.f32 0.0, %v309
        %v313 = vsub.f32 0.0, %v311
        %v314 = vadd.f32 %v292, %v312
        %v315 = vadd.f32 %v293, %v313
        %vm316 = vcmask 31744
        %v317 = vsel %vm316, %v314, -inf
        %vm318 = vcmask 25600
        %v319 = vsel %vm318, %v315, -inf
        %v320 = vmax.f32 %v317, %v319
        %v321 = vrot.slane %v320, 4
        %v322 = vmax.f32 %v320, %v321
        %v323 = vrot.slane %v322, 2
        %v324 = vmax.f32 %v322, %v323
        %v325 = vrot.slane %v324, 1
        %v326 = vmax.f32 %v324, %v325
        %v327 = vlaneseq
        %v328 = vshrl.u32 %v327, 7
        %v329 = vadd.s32 %v328, 8
        %vm330 = vcmp.ge.f32.partialorder %v314, %v326
        %vm331 = vcmp.ge.f32.partialorder %v315, %v326
        %v332 = vsel %vm330, %v328, 10
        %v333 = vsel %vm331, %v329, 10
        %v334 = vsel %vm316, %v332, 2147483647
        %v335 = vsel %vm318, %v333, 2147483647
        %vm336 = vcmp.lt.s32.totalorder %v334, %v335
        %v337 = vsel %vm336, %v334, %v335
        %v338 = vrot.slane %v337, 4
        %vm339 = vcmp.lt.s32.totalorder %v337, %v338
        %v340 = vsel %vm339, %v337, %v338
        %v341 = vrot.slane %v340, 2
        %vm342 = vcmp.lt.s32.totalorder %v340, %v341
        %v343 = vsel %vm342, %v340, %v341
        %v344 = vrot.slane %v343, 1
        %vm345 = vcmp.lt.s32.totalorder %v343, %v344
        %v346 = vsel %vm345, %v343, %v344
        %vm347 = vcmp.eq.s32.totalorder %v328, %v346
        %vm348 = vcmp.eq.s32.totalorder %v329, %v346
        %v349 = vsel %vm347, 1, 0
        %v350 = vsel %vm348, 1, 0
        %v351 = vcvt.s32.f32 %v349
        %v352 = vcvt.s32.f32 %v350
        %353 = vst.msk [vmem:[%s291] sm:$0xff] %vm316, %v351
        %354 = vst.msk [vmem:[%s291 + $0x8] sm:$0x3] %vm318, %v352
        %v355 = vsel %vm316, %v292, -inf
        %v356 = vsel %vm318, %v293, -inf
        %v357 = vmax.f32 %v355, %v356
        %v358 = vrot.slane %v357, 4
        %v359 = vmax.f32 %v357, %v358
        %v360 = vrot.slane %v359, 2
        %v361 = vmax.f32 %v359, %v360
        %v362 = vrot.slane %v361, 1
        %v363 = vmax.f32 %v361, %v362
        %v364 = vsub.f32 %v292, %v363
        %v365 = vsub.f32 %v293, %v363
        %v366 = vmul.f32 %v364, 1.442695
        %v367 = vpow.pop %v366
        %v368 = vmul.f32 %v365, 1.442695
        %v369 = vpow.pop %v368
        %v370 = vsel %vm316, %v367, 0.0
        %v371 = vsel %vm318, %v369, 0.0
        %v372 = vadd.f32 %v370, %v371
        %v373 = vrot.slane %v372, 4
        %v374 = vadd.f32 %v372, %v373
        %v375 = vrot.slane %v374, 2
        %v376 = vadd.f32 %v374, %v375
        %v377 = vrot.slane %v376, 1
        %v378 = vadd.f32 %v376, %v377
        %v379 = vlog2.pop %v378
        %v380 = vmul.f32 %v379, 0.6931472
        %v381 = vsub.f32 %v364, %v380
        %v382 = vsub.f32 %v365, %v380
        %v383 = vrcp.pop %v378
        %v384 = vmul.f32 %v378, %v383
        %v385 = vsub.f32 1.0, %v384
        %v386 = vmul.f32 %v383, %v385
        %v387 = vadd.f32 %v383, %v386
        %vm388 = vweird.f32 %v378
        %vm389 = vweird.f32 %v383
        %vm390 = vmor %vm388, %vm389
        %v391 = vsel %vm390, %v383, %v387
        %v392 = vand.u32 2147483647, %v378
        %vm393 = vcmp.eq.f32.partialorder %v392, 8.507059e+37
        %v394 = vand.u32 %v378, 2147483648
        %v395 = vor.u32 1.1754944e-38, %v394
        %v396 = vsel %vm393, %v395, %v391
        %v397 = vmul.f32 1.0, %v396
        %v398 = vmul.f32 %v367, %v397
        %v399 = vmul.f32 %v369, %v397
        %401 = vset.pattern.permute.xlu0 0
        %402 = vperm.xlu0 %401, %v296
        %v403 = vpop.permute.xlu0 %402
        %406 = vset.pattern.permute.xlu0 0
        %407 = vperm.xlu0 %406, %v297
        %v408 = vpop.permute.xlu0 %407
        %v410 = vsub.f32 %v381, %v403
        %v411 = vsub.f32 %v382, %v408
        %v412 = vmul.f32 %v398, %v410
        %v413 = vmul.f32 %v399, %v411
        %v414 = vsel %vm316, %v412, 0.0
        %v415 = vsel %vm318, %v413, 0.0
        %v416 = vadd.f32 %v414, %v415
        %v417 = vrot.slane %v416, 4
        %v418 = vadd.f32 %v416, %v417
        %v419 = vrot.slane %v418, 2
        %v420 = vadd.f32 %v418, %v419
        %v421 = vrot.slane %v420, 1
        %v422 = vadd.f32 %v420, %v421
        %vm423 = vcmask 24576
        %424 = vst.msk [vmem:[%s262] sm:$0x1] %vm423, %v422
        %p425 = scmp.lt.s32.totalorder %s23, 1
        %s426 = scalar_select %p425, %s23, 1
        %p427 = scmp.lt.s32.totalorder %s24, 0
        %s428 = scalar_select %p427, %s24, 0
        %s429 = smul.addr %s426, 2
        %s430 = sadd.s32 %s428, %s429
        %s431 = smul.addr %s430, 8
        %s432 = scalar_lea.vmem %s3, %s431
        %s433 = sand.u32 %s151, 1
        %s434 = scalar_lea.sflag [#allocation3], %s433
        %s435 = sand.u32 %s151, 1
        %s436 = scalar_lea.vmem [#allocation2], %s435
        // Predicated region
        $region33: #{concrete_relaxation_forward.1} parent=31 // pred_check
          %p437 = pneg %p133
        $region34: #{concrete_relaxation_forward.1} parent=31 // pred_check_branch
          %439 = sbr.rel (%p437) target = $region36
        $region35: #{concrete_relaxation_forward.1} parent=31 // pred_region
          _
        $region36: #{concrete_relaxation_forward.1} parent=31 // pred_fallthru
          _
        // Predicated region
        $region37: #{concrete_relaxation_forward.1} parent=31 // pred_check
          %p440 = pneg %p161
        $region38: #{concrete_relaxation_forward.1} parent=31 // pred_check_branch
          %442 = sbr.rel (%p440) target = $region40
        $region39: #{concrete_relaxation_forward.1} parent=31 // pred_region
          %444 = vsyncadd %s434, 0
          %s445 = sadd.s32 %s24, %s23
          %s446 = scalar_lea.hbm %s4, %s445
          %s448 = sshll.u32 %s436, 4
          %s449 = int_to_ptr.vmem [resolvable:$true] %s448
          %s450 = sshll.u32 %s446, 4
          %s451 = int_to_ptr.hbm [resolvable:$true] %s450
          %453 = dma.vmem_to_hbm [thread:$0]  %s449, 16, %s451, %s434
        $region40: #{concrete_relaxation_forward.1} parent=31 // pred_fallthru
          _
      $region32: #{concrete_relaxation_forward.1} parent=5 // pred_fallthru
        _
      %p454 = scmp.le.s32.totalorder 2, %s14
      // Predicated region
      $region41: #{concrete_relaxation_forward.1} parent=5 // pred_check
        %p455 = pneg %p454
      $region42: #{concrete_relaxation_forward.1} parent=5 // pred_check_branch
        %457 = sbr.rel (%p455) target = $region44
      $region43: #{concrete_relaxation_forward.1} parent=5 // pred_region
        %s458 = ssub.s32 %s14, 2
        // Predicated region
        $region45: #{concrete_relaxation_forward.1} parent=43 // pred_check
          %p459 = pneg %p139
        $region46: #{concrete_relaxation_forward.1} parent=43 // pred_check_branch
          %461 = sbr.rel (%p459) target = $region48
        $region47: #{concrete_relaxation_forward.1} parent=43 // pred_region
          %p462 = scmp.lt.s32.totalorder %s25, 1
          %s463 = scalar_select %p462, %s25, 1
          %p464 = scmp.lt.s32.totalorder %s26, 0
          %s465 = scalar_select %p464, %s26, 0
          %s466 = smul.addr %s463, 2
          %s467 = sadd.s32 %s465, %s466
          %s468 = smul.addr %s467, 8
          %s469 = scalar_lea.vmem %s3, %s468
        $region48: #{concrete_relaxation_forward.1} parent=43 // pred_fallthru
          _
        // Predicated region
        $region49: #{concrete_relaxation_forward.1} parent=43 // pred_check
          %p470 = pneg %p167
        $region50: #{concrete_relaxation_forward.1} parent=43 // pred_check_branch
          %472 = sbr.rel (%p470) target = $region52
        $region51: #{concrete_relaxation_forward.1} parent=43 // pred_region
          %s473 = sand.u32 %s152, 1
          %s474 = scalar_lea.sflag [#allocation3], %s473
          %s475 = sand.u32 %s152, 1
          %s476 = scalar_lea.vmem [#allocation2], %s475
          %478 = dma.done %s474, 16
        $region52: #{concrete_relaxation_forward.1} parent=43 // pred_fallthru
          _
      $region44: #{concrete_relaxation_forward.1} parent=5 // pred_fallthru
        _
    $region6: #{concrete_relaxation_forward.1} parent=1 // loop_footer
      %s18 = sadd.s32 1, %s14
    $region7: #{concrete_relaxation_forward.1} parent=1 // loop_footer_branch
      %13 = sbr.rel target = $region3
    $region8: #{concrete_relaxation_forward.1} parent=1 // loop_exit
      _
    %479 = vsyncpa [#allocation3], 1
    %s480 = scalar_lea.sflag [#allocation3], 1
    %481 = vsyncpa %s480, 1

</llo_original>
